<compile_context>
chip_gen: v7x
topology: tpu7x:2x2x1
jax: 0.10.0
libtpu: 0.0.40
codegen_flags: <defaults>
</compile_context>

<pallas_src>
import functools

import jax
import jax.numpy as jnp
from jax.experimental import pallas as pl
from jax.experimental.pallas import tpu as pltpu


def _round_up(x, m):
    return ((x + m - 1) // m) * m


# --------------------------------------------------------------------------------------
# Kernel: one vocab tile per grid step.  HBM-bound streaming W_B^T; MXU does the matmul.
# --------------------------------------------------------------------------------------
def _word2vec_kernel(h_ref,     # VMEM : (N, E_pad)  bf16  embeddings + bias (resident)
                     wb_ref,    # VMEM : (E_pad, TV) bf16  tile of W_B^T
                     bb_ref,    # VMEM : (1, TV)     f32   tile of b_B
                     out_ref):  # VMEM : (N, TV)     f32   output tile
    # layer_B on this vocab tile: bf16 MXU operands, f32 accumulation.
    logits = jnp.dot(h_ref[...], wb_ref[...],
                     preferred_element_type=jnp.float32) + bb_ref[...]

    # Softmax over dim=0 (per vocab column), exactly like nn.Softmax(dim=0).
    # Columns are independent, so tiling / zero-padding the vocab axis is safe.
    m = jnp.max(logits, axis=0, keepdims=True)
    e = jnp.exp(logits - m)
    denom = jnp.sum(e, axis=0, keepdims=True)
    out_ref[...] = (e * pl.reciprocal(denom, approx=True)).astype(out_ref.dtype)


# --------------------------------------------------------------------------------------
# One-time parameter preparation (transpose / pad / cast).  Do NOT call this per forward.
# --------------------------------------------------------------------------------------
def prepare_params(w_a, b_a, w_b, b_b, *, tile_v=2048):
    """w_a: (E, V), b_a: (E,), w_b: (V, E), b_b: (V,)  -- PyTorch (out, in) convention."""
    embed_size, voc_size = w_a.shape
    f32 = jnp.float32

    e_pad = _round_up(embed_size, 128)
    tv = min(_round_up(tile_v, 128), _round_up(voc_size, 128))
    v_pad = _round_up(voc_size, tv)

    wa_t = jnp.zeros((voc_size, e_pad), f32).at[:, :embed_size].set(
        jnp.asarray(w_a, f32).T)                                          # (V, E_pad) f32
    ba2d = jnp.zeros((1, e_pad), f32).at[:, :embed_size].set(
        jnp.asarray(b_a, f32).reshape(1, -1))                             # (1, E_pad) f32
    wb_t = jnp.zeros((e_pad, v_pad), jnp.bfloat16).at[:embed_size, :voc_size].set(
        jnp.asarray(w_b, f32).T.astype(jnp.bfloat16))                     # (E_pad, V_pad) bf16
    bb2d = jnp.zeros((1, v_pad), f32).at[:, :voc_size].set(
        jnp.asarray(b_b, f32).reshape(1, -1))                             # (1, V_pad) f32

    wa_t, ba2d, wb_t, bb2d = jax.block_until_ready((wa_t, ba2d, wb_t, bb2d))
    return {"wa_t": wa_t, "ba": ba2d, "wb_t": wb_t, "bb": bb2d,
            "voc_size": voc_size, "embed_size": embed_size}


# --------------------------------------------------------------------------------------
# Forward on token ids (the fast path).
# --------------------------------------------------------------------------------------
@functools.partial(jax.jit, static_argnames=("voc_size", "embed_size", "tile_v"))
def _forward_ids(ids, wa_t, ba, wb_t, bb, *, voc_size, embed_size, tile_v=2048):
    n = ids.shape[0]
    e_pad = wa_t.shape[1]
    v_pad = wb_t.shape[1]
    tv = min(_round_up(tile_v, 128), v_pad)
    n_tiles = v_pad // tv

    # layer_A hoisted out of the kernel: a cheap N-row gather + bias, cast to bf16 once.
    h = (wa_t[ids] + ba).astype(jnp.bfloat16)                             # (N, E_pad) bf16

    # VMEM budget: double-buffered W_B^T tile + output tile + b_B tile + resident h.
    vmem_need = (2 * e_pad * tv * 2        # W_B^T (bf16)
                 + 2 * n * tv * 4          # output (f32)
                 + 2 * tv * 4              # b_B (f32)
                 + 2 * n * e_pad * 2)      # h (bf16)
    vmem_limit = int(min(64 * 1024 * 1024, max(16 * 1024 * 1024, 2 * vmem_need)))

    out_padded = pl.pallas_call(
        _word2vec_kernel,
        out_shape=jax.ShapeDtypeStruct((n, v_pad), jnp.float32),
        grid=(n_tiles,),
        in_specs=[
            pl.BlockSpec((n, e_pad), lambda j: (0, 0)),       # h, same block every step
            pl.BlockSpec((e_pad, tv), lambda j: (0, j)),      # W_B^T vocab tile (streamed)
            pl.BlockSpec((1, tv), lambda j: (0, j)),          # b_B vocab tile
        ],
        out_specs=pl.BlockSpec((n, tv), lambda j: (0, j)),    # lane-dense output tile
        compiler_params=pltpu.CompilerParams(
            # No cross-tile state anymore -> vocab axis is truly parallel (v7x megacore).
            dimension_semantics=("parallel",),
            vmem_limit_bytes=vmem_limit,
        ),
    )(h, wb_t, bb)

    return out_padded[:, :voc_size]


def word2vec_forward_ids(ids, params, *, tile_v=2048):
    """ids: (N,) int32 token indices."""
    return _forward_ids(ids.astype(jnp.int32), params["wa_t"], params["ba"],
                        params["wb_t"], params["bb"],
                        voc_size=params["voc_size"], embed_size=params["embed_size"],
                        tile_v=tile_v)


# --------------------------------------------------------------------------------------
# Compatibility shim: one-hot input, as the PyTorch module's docstring requires.
# --------------------------------------------------------------------------------------
def word2vec_forward(x, params, *, get_embed=False, tile_v=2048):
    """x: (..., voc_size) one-hot rows; matches Word2Vec.forward(x, get_embed)."""
    voc_size = params["voc_size"]
    x2d = jnp.asarray(x, jnp.float32).reshape(-1, voc_size)
    if get_embed:
        # layer_A only (tiny): h = x @ W_A.T + b_A, exact f32, no kernel needed.
        e = params["embed_size"]
        return x2d @ params["wa_t"][:, :e] + params["ba"][0, :e]
    # NOTE: argmax-based index recovery assumes strictly one-hot rows (the documented
    # contract); all-zero / tied rows silently resolve to index 0.
    ids = jnp.argmax(x2d, axis=-1).astype(jnp.int32)
    return word2vec_forward_ids(ids, params, tile_v=tile_v)


def init_params(key, voc_size, embed_size):
    """Deterministic init mimicking torch.nn.Linear defaults (uniform +/- 1/sqrt(fan_in))."""
    k1, k2, k3, k4 = jax.random.split(key, 4)
    bound_a = 1.0 / jnp.sqrt(voc_size)
    bound_b = 1.0 / jnp.sqrt(embed_size)
    w_a = jax.random.uniform(k1, (embed_size, voc_size), jnp.float32, -bound_a, bound_a)
    b_a = jax.random.uniform(k2, (embed_size,), jnp.float32, -bound_a, bound_a)
    w_b = jax.random.uniform(k3, (voc_size, embed_size), jnp.float32, -bound_b, bound_b)
    b_b = jax.random.uniform(k4, (voc_size,), jnp.float32, -bound_b, bound_b)
    return w_a, b_a, w_b, b_b


if __name__ == "__main__":
    voc_size = 32     # len(input_voc) — synthetic vocabulary
    embed_size = 16
    batch = 8

    key = jax.random.PRNGKey(0)
    k_params, k_idx = jax.random.split(key)
    w_a, b_a, w_b, b_b = init_params(k_params, voc_size, embed_size)

    # One-time layout prep (transpose / pad / bf16 cast) — outside the per-call path.
    params = prepare_params(w_a, b_a, w_b, b_b, tile_v=2048)

    # One-hot input vectors of size voc_size (as the module's docstring requires).
    tok = jax.random.randint(k_idx, (batch,), 0, voc_size)
    x = jax.nn.one_hot(tok, voc_size, dtype=jnp.float32)     # (batch, voc_size)

    out = word2vec_forward(x, params)                        # one-hot compatibility path
    out = jax.block_until_ready(out)

    out_ids = word2vec_forward_ids(tok, params)              # direct-ids fast path
    out_ids = jax.block_until_ready(out_ids)

    # Pure-JAX f32 reference of the exact module math.
    h_ref = x @ w_a.T + b_a
    logits_ref = h_ref @ w_b.T + b_b
    ref = jax.nn.softmax(logits_ref, axis=0)

    assert out.shape == (batch, voc_size)
    # bf16 MXU operands + approx reciprocal -> slightly looser tolerance than pure f32.
    assert jnp.allclose(out, ref, atol=2e-3, rtol=2e-2), float(jnp.max(jnp.abs(out - ref)))
    assert jnp.allclose(out_ids, out, atol=1e-6), "ids path and one-hot path disagree"

    # get_embed=True branch (layer_A only), exact f32.
    emb = jax.block_until_ready(word2vec_forward(x, params, get_embed=True))
    assert jnp.allclose(emb, h_ref, atol=1e-5, rtol=1e-5)

    print("KERNEL_OK")
</pallas_src>

<mosaic_0001>
module attributes {stable_mosaic.version = 11 : i64} {
  func.func @_word2vec_kernel(%arg0: i32, %arg1: memref<8x128xbf16, #tpu.memory_space<vmem>>, %arg2: memref<128x128xbf16, #tpu.memory_space<vmem>>, %arg3: memref<1x128xf32, #tpu.memory_space<vmem>>, %arg4: memref<8x128xf32, #tpu.memory_space<vmem>>) attributes {dimension_semantics = [#tpu.dimension_semantics<parallel>], iteration_bounds = array<i64: 1>, scalar_prefetch = 0 : i64, scratch_operands = 0 : i64, tpu.core_type = #tpu.core_type<tc>, window_params = [{pipeline_mode = #tpu.pipeline_mode<synchronous>, transform_indices = @transform_0, window_bounds = array<i64: 8, 128>}, {transform_indices = @transform_1, window_bounds = array<i64: 128, 128>}, {transform_indices = @transform_2, window_bounds = array<i64: 1, 128>}, {transform_indices = @transform_3, window_bounds = array<i64: 8, 128>}]} {
    %c0 = arith.constant 0 : index
    %c0_0 = arith.constant 0 : index
    %0 = vector.load %arg1[%c0, %c0_0] : memref<8x128xbf16, #tpu.memory_space<vmem>>, vector<8x128xbf16>
    %c0_1 = arith.constant 0 : index
    %c0_2 = arith.constant 0 : index
    %1 = vector.load %arg2[%c0_1, %c0_2] : memref<128x128xbf16, #tpu.memory_space<vmem>>, vector<128x128xbf16>
    %cst = arith.constant dense<0.000000e+00> : vector<8x128xf32>
    %2 = tpu.matmul %0, %1, %cst {dimension_numbers = #tpu.dot_dimension_numbers<[1], [0], [0], [1], [0, 0, 1, 1], [], []>} : vector<8x128xbf16>, vector<128x128xbf16>, vector<8x128xf32> -> vector<8x128xf32>
    %c0_3 = arith.constant 0 : index
    %c0_4 = arith.constant 0 : index
    %3 = vector.load %arg3[%c0_3, %c0_4] : memref<1x128xf32, #tpu.memory_space<vmem>>, vector<1x128xf32>
    %4 = vector.broadcast %3 : vector<1x128xf32> to vector<8x128xf32>
    %5 = arith.addf %2, %4 : vector<8x128xf32>
    %cst_5 = arith.constant dense<0xFF800000> : vector<128xf32>
    %6 = vector.multi_reduction <maximumf>, %5, %cst_5 [0] : vector<8x128xf32> to vector<128xf32>
    %7 = vector.shape_cast %6 : vector<128xf32> to vector<1x128xf32>
    %8 = vector.broadcast %7 : vector<1x128xf32> to vector<8x128xf32>
    %9 = arith.subf %5, %8 : vector<8x128xf32>
    %10 = math.exp %9 : vector<8x128xf32>
    %cst_6 = arith.constant dense<0.000000e+00> : vector<128xf32>
    %11 = vector.multi_reduction <add>, %10, %cst_6 [0] : vector<8x128xf32> to vector<128xf32>
    %12 = vector.shape_cast %11 : vector<128xf32> to vector<1x128xf32>
    %13 = tpu.reciprocal %12 {approx = true} : vector<1x128xf32> -> vector<1x128xf32>
    %14 = vector.broadcast %13 : vector<1x128xf32> to vector<8x128xf32>
    %15 = arith.mulf %10, %14 : vector<8x128xf32>
    %c0_7 = arith.constant 0 : index
    %c0_8 = arith.constant 0 : index
    %16 = vector.load %arg4[%c0_7, %c0_8] : memref<8x128xf32, #tpu.memory_space<vmem>>, vector<8x128xf32>
    tpu.vector_store %arg4[%c0_7, %c0_8], %15 {strides = array<i32>} : memref<8x128xf32, #tpu.memory_space<vmem>>, vector<8x128xf32>,
    return
  }
  func.func @transform_0(%arg0: i32) -> (i32, i32) {
    %c0_i32 = arith.constant 0 : i32
    %c0_i32_0 = arith.constant 0 : i32
    %c0_i32_1 = arith.constant 0 : i32
    return %c0_i32, %c0_i32_0 : i32, i32
  }
  func.func @transform_1(%arg0: i32) -> (i32, i32) {
    %c0_i32 = arith.constant 0 : i32
    %c0_i32_0 = arith.constant 0 : i32
    return %c0_i32, %arg0 : i32, i32
  }
  func.func @transform_2(%arg0: i32) -> (i32, i32) {
    %c0_i32 = arith.constant 0 : i32
    %c0_i32_0 = arith.constant 0 : i32
    return %c0_i32, %arg0 : i32, i32
  }
  func.func @transform_3(%arg0: i32) -> (i32, i32) {
    %c0_i32 = arith.constant 0 : i32
    %c0_i32_0 = arith.constant 0 : i32
    return %c0_i32, %arg0 : i32, i32
  }
}

</mosaic_0001>

<llo_original>
// kernel: _forward_ids.1
$region0: #{_forward_ids.1}
  #allocation0 [shape = 'u32[]', space=smem, size = 0x4, offset = 0x4, fixed_abs, tag = 'smem constant byte address 0x4 - core index']
  #allocation1 [shape = 'u32[144,128]{1,0:T(1,128)}', space=vmem, size = 0x12000, scoped, tag = 'internal scratch']
  %s0 = inlined_call_operand.vmem [shape: bf16[8,128], index: 0, kind: input, shape index: {}]
  %s1 = inlined_call_operand.vmem [shape: bf16[128,128], index: 1, kind: input, shape index: {}]
  %s2 = inlined_call_operand.vmem [shape: f32[1,128], index: 2, kind: input, shape index: {}]
  %s3 = inlined_call_operand.hbm [shape: f32[8,128], index: 3, kind: output, shape index: {}]
  %s4 = sld [smem:[#allocation0]]
  $region22: #{_forward_ids.1} parent=0
    _
  %s6 = ssub.s32 1, %s4
  %s7 = scalar_select 0, %s6, %s4
  $region1: #{_forward_ids.1} parent=0
    #allocation2 [shape = 'u8[4096]{0}', space=vmem, size = 0x1000, scoped, tag = 'output window, operand 0, single buffered']
    #allocation3 [shape = 's32[1]{0}', space=sflag, size = 0x4, scoped, tag = 'scoped memory for _forward_ids.1']
    %8 = vsyncpa [#allocation3], 0
    // Predicated region
    $region2: #{_forward_ids.1} parent=1 // pred_check
      _
    $region3: #{_forward_ids.1} parent=1 // pred_check_branch
      %10 = sbr.rel (0) target = $region5
    $region4: #{_forward_ids.1} parent=1 // pred_region
      _
    $region5: #{_forward_ids.1} parent=1 // pred_fallthru
      _
    // Predicated region
    $region6: #{_forward_ids.1} parent=1 // pred_check
      _
    $region7: #{_forward_ids.1} parent=1 // pred_check_branch
      %12 = sbr.rel (0) target = $region9
    $region8: #{_forward_ids.1} parent=1 // pred_region
      _
    $region9: #{_forward_ids.1} parent=1 // pred_fallthru
      _
    // Predicated region
    $region10: #{_forward_ids.1} parent=1 // pred_check
      _
    $region11: #{_forward_ids.1} parent=1 // pred_check_branch
      %14 = sbr.rel (0) target = $region13
    $region12: #{_forward_ids.1} parent=1 // pred_region
      _
    $region13: #{_forward_ids.1} parent=1 // pred_fallthru
      _
    %v16 = vld [vmem:[%s0] sm:$0xf]
    %v17 = vld [vmem:[%s1] sm:$0xf]
    %v18 = vld [vmem:[%s1 + $0x4] sm:$0xf]
    %v19 = vld [vmem:[%s1 + $0x8] sm:$0xf]
    %v20 = vld [vmem:[%s1 + $0xc] sm:$0xf]
    %v21 = vld [vmem:[%s1 + $0x10] sm:$0xf]
    %v22 = vld [vmem:[%s1 + $0x14] sm:$0xf]
    %v23 = vld [vmem:[%s1 + $0x18] sm:$0xf]
    %v24 = vld [vmem:[%s1 + $0x1c] sm:$0xf]
    %v25 = vld [vmem:[%s1 + $0x20] sm:$0xf]
    %v26 = vld [vmem:[%s1 + $0x24] sm:$0xf]
    %v27 = vld [vmem:[%s1 + $0x28] sm:$0xf]
    %v28 = vld [vmem:[%s1 + $0x2c] sm:$0xf]
    %v29 = vld [vmem:[%s1 + $0x30] sm:$0xf]
    %v30 = vld [vmem:[%s1 + $0x34] sm:$0xf]
    %v31 = vld [vmem:[%s1 + $0x38] sm:$0xf]
    %v32 = vld [vmem:[%s1 + $0x3c] sm:$0xf]
    %v33 = vld [vmem:[%s2] sm:$0x1]
    %v35 = vlaneseq
    %v36 = vshrl.u32 %v35, 7
    %v37 = vsub.s32 0, %v36
    %v38 = vrot.slane %v33, %v37
    %v56 = vunpack.c.l.b16 %v17
    %v57 = vunpack.c.l.b16 %v18
    %v58 = vunpack.c.l.b16 %v19
    %v59 = vunpack.c.l.b16 %v20
    %v60 = vunpack.c.l.b16 %v21
    %v61 = vunpack.c.l.b16 %v22
    %v62 = vunpack.c.l.b16 %v23
    %v63 = vunpack.c.l.b16 %v24
    %v64 = vunpack.c.l.b16 %v25
    %v65 = vunpack.c.l.b16 %v26
    %v66 = vunpack.c.l.b16 %v27
    %v67 = vunpack.c.l.b16 %v28
    %v68 = vunpack.c.l.b16 %v29
    %v69 = vunpack.c.l.b16 %v30
    %v70 = vunpack.c.l.b16 %v31
    %v71 = vunpack.c.l.b16 %v32
    %v72 = vpack.c.b16 %v57, %v56
    %v73 = vpack.c.b16 %v59, %v58
    %v74 = vpack.c.b16 %v61, %v60
    %v75 = vpack.c.b16 %v63, %v62
    %v76 = vpack.c.b16 %v65, %v64
    %v77 = vpack.c.b16 %v67, %v66
    %v78 = vpack.c.b16 %v69, %v68
    %v79 = vpack.c.b16 %v71, %v70
    %88 = vmatprep.subr.bf16.mxu0 0
    %89 = vmatpush1.bf16.msra.mxu0 %v72
    %90 = vmatprep.subr.bf16.mxu0 0
    %91 = vmatpush1.bf16.msra.mxu0 %v73
    %92 = vmatprep.subr.bf16.mxu0 0
    %93 = vmatpush1.bf16.msra.mxu0 %v74
    %94 = vmatprep.subr.bf16.mxu0 0
    %95 = vmatpush1.bf16.msra.mxu0 %v75
    %96 = vmatprep.subr.bf16.mxu0 0
    %97 = vmatpush1.bf16.msra.mxu0 %v76
    %98 = vmatprep.subr.bf16.mxu0 0
    %99 = vmatpush1.bf16.msra.mxu0 %v77
    %100 = vmatprep.subr.bf16.mxu0 0
    %101 = vmatpush1.bf16.msra.mxu0 %v78
    %102 = vmatprep.subr.bf16.mxu0 0
    %103 = vmatpush1.bf16.msra.mxu0 %v79
    %104 = vmatprep.subr.bf16.mxu0 0
    %105 = vmatpush1.bf16.msra.mxu0 0
    %106 = vmatprep.subr.bf16.mxu0 0
    %107 = vmatpush1.bf16.msra.mxu0 0
    %108 = vmatprep.subr.bf16.mxu0 0
    %109 = vmatpush1.bf16.msra.mxu0 0
    %110 = vmatprep.subr.bf16.mxu0 0
    %111 = vmatpush1.bf16.msra.mxu0 0
    %112 = vmatprep.subr.bf16.mxu0 0
    %113 = vmatpush1.bf16.msra.mxu0 0
    %114 = vmatprep.subr.bf16.mxu0 0
    %115 = vmatpush1.bf16.msra.mxu0 0
    %116 = vmatprep.subr.bf16.mxu0 0
    %117 = vmatpush1.bf16.msra.mxu0 0
    %118 = vmatprep.subr.bf16.mxu0 0
    %119 = vmatpush1.bf16.msra.mxu0 0
    %120 = vmatprep.mubr.bf16.mxu0 0
    %121 = vmatmul.mubr.bf16.gmra.mrb[0].mxu0 %v16
    %v122 = vpop.f32.mrb[0].mxu0
    %v123 = vadd.f32 %v38, %v122
    %v124 = vpop.f32.mrb[0].mxu0
    %v125 = vpop.f32.mrb[0].mxu0
    %v126 = vpop.f32.mrb[0].mxu0
    %127 = vdwg.mxu0
    %v128 = vrot.slane %v123, 4
    %v129 = vmax.f32 %v123, %v128
    %v130 = vrot.slane %v129, 2
    %v131 = vmax.f32 %v129, %v130
    %v132 = vrot.slane %v131, 1
    %v133 = vmax.f32 %v131, %v132
    %v134 = vsub.f32 %v123, %v133
    %v135 = vmul.f32 %v134, 1.442695
    %v136 = vpow.pop %v135
    %v137 = vrot.slane %v136, 4
    %v138 = vadd.f32 %v136, %v137
    %v139 = vrot.slane %v138, 2
    %v140 = vadd.f32 %v138, %v139
    %v141 = vrot.slane %v140, 1
    %v142 = vadd.f32 %v140, %v141
    %v143 = vrcp.pop %v142
    %v144 = vmul.f32 %v136, %v143
    %145 = vst [vmem:[#allocation2] sm:$0xff] %v144
    // Predicated region
    $region14: #{_forward_ids.1} parent=1 // pred_check
      _
    $region15: #{_forward_ids.1} parent=1 // pred_check_branch
      %147 = sbr.rel (0) target = $region17
    $region16: #{_forward_ids.1} parent=1 // pred_region
      %s149 = ssub.s32 128, 128
      %150 = vsyncadd [#allocation3], %s149
      %s152 = sshll.u32 [#allocation2], 4
      %s153 = int_to_ptr.vmem [resolvable:$true] %s152
      %155 = dma.vmem_to_hbm [thread:$0]  %s153, 128, %s3, [#allocation3]
    $region17: #{_forward_ids.1} parent=1 // pred_fallthru
      _
    // Predicated region
    $region18: #{_forward_ids.1} parent=1 // pred_check
      _
    $region19: #{_forward_ids.1} parent=1 // pred_check_branch
      %157 = sbr.rel (0) target = $region21
    $region20: #{_forward_ids.1} parent=1 // pred_region
      %158 = dma.done [#allocation3], 128
    $region21: #{_forward_ids.1} parent=1 // pred_fallthru
      _
    %159 = vsyncpa [#allocation3], 1

</llo_original>
